<compile_context>
chip_gen: v5e
topology: v5e:2x2
jax: 0.10.0
libtpu: 0.0.40
codegen_flags: <defaults>
</compile_context>

<pallas_src>
import functools

import jax
import jax.numpy as jnp
import numpy as np
from jax.experimental import pallas as pl
from jax.experimental.pallas import tpu as pltpu


def _experts_kernel(x_ref, gu_ref, down_ref, o_ref, acc_ref, *, td):
    """Multi-D-tile path: accumulate partial down-projections across D tiles."""
    d = pl.program_id(2)

    @pl.when(d == 0)
    def _init():
        acc_ref[...] = jnp.zeros_like(acc_ref)

    x = x_ref[0]           # (TT, H)
    gu_w = gu_ref[0, 0]    # (H, 2*TD) contiguous [gate_tile | up_tile]
    down_w = down_ref[0]   # (TD, H)

    # One fused MXU matmul for gate+up with f32 accumulation.
    gate_up = jnp.dot(x, gu_w, preferred_element_type=jnp.float32)   # (TT, 2TD)
    gate = gate_up[:, :td]
    up = gate_up[:, td:]

    # SiLU gate fused in f32 (EUP sigmoid + VPU multiplies).
    hidden = up * (gate * jax.nn.sigmoid(gate))                       # (TT, TD) f32

    # Partial down-projection for this D tile, accumulated in f32.
    # NOTE: hidden is downcast to the weight dtype (bf16 in production) before
    # the down matmul — intentional precision/bandwidth trade-off.
    acc_ref[...] += jnp.dot(hidden.astype(down_w.dtype), down_w,
                            preferred_element_type=jnp.float32)       # (TT, H)

    @pl.when(d == pl.num_programs(2) - 1)
    def _store():
        o_ref[0] = acc_ref[...].astype(o_ref.dtype)


def _experts_kernel_single(x_ref, gu_ref, down_ref, o_ref, *, td):
    """Fast path when expert_dim fits one TD tile: no f32 accumulator scratch."""
    x = x_ref[0]           # (TT, H)
    gu_w = gu_ref[0, 0]    # (H, 2*TD)
    down_w = down_ref[0]   # (TD, H)

    gate_up = jnp.dot(x, gu_w, preferred_element_type=jnp.float32)
    gate = gate_up[:, :td]
    up = gate_up[:, td:]
    hidden = up * (gate * jax.nn.sigmoid(gate))
    o_ref[0] = jnp.dot(hidden.astype(down_w.dtype), down_w,
                       preferred_element_type=jnp.float32).astype(o_ref.dtype)


def _vmem_capacity_bytes():
    """Physical VMEM of the current generation; conservative fallback = 64 MiB."""
    try:
        return int(pltpu.get_tpu_info().vmem_capacity_bytes)
    except Exception:
        return 64 * 2**20


def _estimate_vmem_bytes(tt, td, hidden_size, w_bytes, x_bytes, n_d):
    """Honest per-kernel VMEM estimate (weights double-buffered + intermediates)."""
    weights_per_step = (2 * td + td) * hidden_size * w_bytes   # gate_up + down tiles
    est = 2 * weights_per_step                                 # double-buffered
    est += 2 * tt * hidden_size * x_bytes                      # x block (2 buffers)
    est += 2 * tt * hidden_size * x_bytes                      # out block (2 buffers)
    if n_d > 1:
        est += tt * hidden_size * 4                            # resident f32 acc
    est += tt * 2 * td * 4                                     # f32 gate_up
    est += tt * td * 4                                         # f32 hidden
    est += tt * td * w_bytes                                   # hidden cast copy
    est += tt * hidden_size * 4                                # f32 down partial
    est += 2 * 2**20                                           # Mosaic scratch headroom
    return est


def _choose_tt(t_per_exp, tt_max=256):
    """Token tile: full T if small, else the largest divisor multiple of 8 <= tt_max."""
    if t_per_exp <= tt_max:
        return t_per_exp
    best = None
    for cand in range(8, tt_max + 1, 8):
        if t_per_exp % cand == 0:
            best = cand
    return best if best is not None else t_per_exp


def _choose_td(expert_dim, tt, hidden_size, w_bytes, x_bytes, budget, td_max=2048):
    """Largest 128-multiple divisor of expert_dim whose VMEM estimate fits budget."""
    cands = [c for c in range(128, min(td_max, expert_dim) + 1, 128)
             if expert_dim % c == 0]
    if not cands:
        return None
    best = cands[0]
    for c in cands:
        if _estimate_vmem_bytes(tt, c, hidden_size, w_bytes, x_bytes,
                                expert_dim // c) <= budget:
            best = max(best, c)
    return best


def _pack_gate_up(gate_up_proj, td):
    """(E, H, 2D) -> (E, n_d, H, 2*TD) so each (expert, D-tile) weight block is one
    contiguous [gate_tile | up_tile] slab (single large DMA per grid step).
    In production, store the weights in this layout once, offline."""
    num_experts, hidden_size, two_d = gate_up_proj.shape
    expert_dim = two_d // 2
    n_d = expert_dim // td
    gu = gate_up_proj.reshape(num_experts, hidden_size, 2, n_d, td)
    return jnp.transpose(gu, (0, 3, 1, 2, 4)).reshape(
        num_experts, n_d, hidden_size, 2 * td)


def llama4_text_experts(hidden_states, gate_up_proj, down_proj, *, td=None, tt=None):
    """hidden_states: (E*T, H); gate_up_proj: (E, H, 2D); down_proj: (E, D, H)."""
    num_experts, hidden_size, two_d = gate_up_proj.shape
    expert_dim = two_d // 2
    assert down_proj.shape == (num_experts, expert_dim, hidden_size)
    tokens = hidden_states.shape[0]
    assert tokens % num_experts == 0
    t_per_exp = tokens // num_experts

    w_bytes = jnp.dtype(gate_up_proj.dtype).itemsize
    x_bytes = jnp.dtype(hidden_states.dtype).itemsize
    vmem_cap = _vmem_capacity_bytes()
    budget = int(0.55 * vmem_cap)   # leave room for the 1.25x limit + compiler scratch

    if tt is None:
        tt = _choose_tt(t_per_exp)
    assert t_per_exp % tt == 0 and (tt % 8 == 0 or tt == t_per_exp), (
        "token tile must divide tokens-per-expert and satisfy the sublane rule")
    n_t = t_per_exp // tt

    if td is None:
        td = _choose_td(expert_dim, tt, hidden_size, w_bytes, x_bytes, budget)
    # TODO(synk): expert_dim not a multiple of 128 would need D-axis padding.
    assert td is not None and expert_dim % td == 0 and td % 128 == 0, (
        "expert_dim must be tileable by a multiple of 128")
    n_d = expert_dim // td

    x = hidden_states.reshape(num_experts, t_per_exp, hidden_size)
    gu_packed = _pack_gate_up(gate_up_proj, td)

    est = _estimate_vmem_bytes(tt, td, hidden_size, w_bytes, x_bytes, n_d)
    vmem_limit = min(max(32 * 2**20, int(1.25 * est)), vmem_cap)

    out_shape = jax.ShapeDtypeStruct(
        (num_experts, t_per_exp, hidden_size), hidden_states.dtype)

    if n_d == 1:
        # Single D tile: no accumulator scratch, write result directly.
        kernel = functools.partial(_experts_kernel_single, td=td)
        grid = (num_experts, n_t)
        in_specs = [
            pl.BlockSpec((1, tt, hidden_size), lambda e, t: (e, t, 0)),
            pl.BlockSpec((1, 1, hidden_size, 2 * td), lambda e, t: (e, 0, 0, 0)),
            pl.BlockSpec((1, td, hidden_size), lambda e, t: (e, 0, 0)),
        ]
        out_specs = pl.BlockSpec((1, tt, hidden_size), lambda e, t: (e, t, 0))
        scratch_shapes = []
        dims = ("parallel", "parallel")
    else:
        kernel = functools.partial(_experts_kernel, td=td)
        grid = (num_experts, n_t, n_d)
        in_specs = [
            # x: resident per (expert, token-tile) across the reduction axis.
            pl.BlockSpec((1, tt, hidden_size), lambda e, t, d: (e, t, 0)),
            # fused [gate_tile | up_tile] contiguous weight slab for D tile d.
            pl.BlockSpec((1, 1, hidden_size, 2 * td), lambda e, t, d: (e, d, 0, 0)),
            # down tile: rows d*TD.. of down_proj (already contiguous).
            pl.BlockSpec((1, td, hidden_size), lambda e, t, d: (e, d, 0)),
        ]
        out_specs = pl.BlockSpec((1, tt, hidden_size), lambda e, t, d: (e, t, 0))
        scratch_shapes = [pltpu.VMEM((tt, hidden_size), jnp.float32)]
        dims = ("parallel", "parallel", "arbitrary")
        # TODO(synk): on v7x, if profiling shows only one TensorCore busy, switch
        # the expert axis to pltpu.CORE_PARALLEL for explicit 2-TC sharding.

    out = pl.pallas_call(
        kernel,
        out_shape=out_shape,
        grid_spec=pltpu.PrefetchScalarGridSpec(
            num_scalar_prefetch=0,
            grid=grid,
            in_specs=in_specs,
            out_specs=out_specs,
            scratch_shapes=scratch_shapes,
        ),
        compiler_params=pltpu.CompilerParams(
            dimension_semantics=dims,
            vmem_limit_bytes=vmem_limit,
        ),
    )(x, gu_packed, down_proj)

    return out.reshape(tokens, hidden_size)


def _reference(hidden_states, gate_up_proj, down_proj):
    E, H, _ = gate_up_proj.shape
    D = down_proj.shape[1]
    x = hidden_states.reshape(E, -1, H)
    gate_up = jnp.einsum("eth,ehd->etd", x, gate_up_proj)
    gate, up = gate_up[..., :D], gate_up[..., D:]
    h = up * jax.nn.silu(gate)
    out = jnp.einsum("etd,edh->eth", h, down_proj)
    return out.reshape(-1, H)


if __name__ == "__main__":
    # Small synthetic config: 4 experts, hidden=128, intermediate=256,
    # 16 tokens/expert.  Forced td=128 / tt=8 exercises both the token-tiled
    # grid and the resident-accumulator reduction path.
    num_experts = 4
    hidden_size = 128
    intermediate_size = 256
    tokens_per_expert = 16
    total_tokens = num_experts * tokens_per_expert

    key = jax.random.PRNGKey(0)
    k_x, k_gu, k_dp = jax.random.split(key, 3)

    hidden_states = jax.random.normal(
        k_x, (total_tokens, hidden_size), dtype=jnp.float32)
    gate_up_proj = jax.random.normal(
        k_gu, (num_experts, hidden_size, 2 * intermediate_size),
        dtype=jnp.float32) * 0.02
    down_proj = jax.random.normal(
        k_dp, (num_experts, intermediate_size, hidden_size),
        dtype=jnp.float32) * 0.02

    ref = _reference(hidden_states, gate_up_proj, down_proj)

    # f32, multi-tile path (n_t=2, n_d=2): token tiling + f32 accumulator.
    out = llama4_text_experts(hidden_states, gate_up_proj, down_proj, td=128, tt=8)
    out = jax.block_until_ready(out)
    np.testing.assert_allclose(np.asarray(out), np.asarray(ref),
                               rtol=1e-4, atol=1e-4)

    # f32, single-D-tile fast path (n_d=1): no accumulator scratch.
    out1 = llama4_text_experts(hidden_states, gate_up_proj, down_proj, td=256)
    out1 = jax.block_until_ready(out1)
    np.testing.assert_allclose(np.asarray(out1), np.asarray(ref),
                               rtol=1e-4, atol=1e-4)

    # bf16 weight-streaming path (bandwidth-optimized production config),
    # automatic TT/TD selection from the physical VMEM budget.
    hs_bf16 = hidden_states.astype(jnp.bfloat16)
    gu_bf16 = gate_up_proj.astype(jnp.bfloat16)
    dp_bf16 = down_proj.astype(jnp.bfloat16)
    out_bf16 = llama4_text_experts(hs_bf16, gu_bf16, dp_bf16)
    out_bf16 = jax.block_until_ready(out_bf16)
    ref_bf16 = _reference(hs_bf16.astype(jnp.float32),
                          gu_bf16.astype(jnp.float32),
                          dp_bf16.astype(jnp.float32))
    np.testing.assert_allclose(np.asarray(out_bf16, dtype=np.float32),
                               np.asarray(ref_bf16),
                               rtol=5e-2, atol=5e-3)

    print("KERNEL_OK")
</pallas_src>

<mosaic_0001>
module attributes {stable_mosaic.version = 11 : i64} {
  func.func @_experts_kernel(%arg0: i32, %arg1: i32, %arg2: i32, %arg3: memref<1x8x128xf32, #tpu.memory_space<vmem>>, %arg4: memref<1x1x128x256xf32, #tpu.memory_space<vmem>>, %arg5: memref<1x128x128xf32, #tpu.memory_space<vmem>>, %arg6: memref<1x8x128xf32, #tpu.memory_space<vmem>>, %arg7: memref<8x128xf32, #tpu.memory_space<vmem>>) attributes {dimension_semantics = [#tpu.dimension_semantics<parallel>, #tpu.dimension_semantics<parallel>, #tpu.dimension_semantics<arbitrary>], iteration_bounds = array<i64: 4, 2, 2>, scalar_prefetch = 0 : i64, scratch_operands = 1 : i64, tpu.core_type = #tpu.core_type<tc>, window_params = [{transform_indices = @transform_0, window_bounds = array<i64: 1, 8, 128>}, {transform_indices = @transform_1, window_bounds = array<i64: 1, 1, 128, 256>}, {transform_indices = @transform_2, window_bounds = array<i64: 1, 128, 128>}, {transform_indices = @transform_3, window_bounds = array<i64: 1, 8, 128>}]} {
    %c0_i32 = arith.constant 0 : i32
    %0 = arith.cmpi eq, %arg2, %c0_i32 : i32
    %1 = arith.extui %0 : i1 to i32
    %c0_i32_0 = arith.constant 0 : i32
    %2 = arith.cmpi ne, %1, %c0_i32_0 : i32
    scf.if %2 {
      %cst_17 = arith.constant 0.000000e+00 : f32
      %26 = vector.broadcast %cst_17 : f32 to vector<8x128xf32>
      %c0_18 = arith.constant 0 : index
      %c0_19 = arith.constant 0 : index
      %27 = vector.load %arg7[%c0_18, %c0_19] : memref<8x128xf32, #tpu.memory_space<vmem>>, vector<8x128xf32>
      tpu.vector_store %arg7[%c0_18, %c0_19], %26 {strides = array<i32>} : memref<8x128xf32, #tpu.memory_space<vmem>>, vector<8x128xf32>,
    } else {
    }
    %c0 = arith.constant 0 : index
    %c0_1 = arith.constant 0 : index
    %c0_2 = arith.constant 0 : index
    %3 = vector.load %arg3[%c0, %c0_1, %c0_2] : memref<1x8x128xf32, #tpu.memory_space<vmem>>, vector<1x8x128xf32>
    %4 = vector.shape_cast %3 : vector<1x8x128xf32> to vector<8x128xf32>
    %c0_3 = arith.constant 0 : index
    %c0_4 = arith.constant 0 : index
    %c0_5 = arith.constant 0 : index
    %c0_6 = arith.constant 0 : index
    %5 = vector.load %arg4[%c0_3, %c0_4, %c0_5, %c0_6] : memref<1x1x128x256xf32, #tpu.memory_space<vmem>>, vector<1x1x128x256xf32>
    %6 = vector.shape_cast %5 : vector<1x1x128x256xf32> to vector<128x256xf32>
    %c0_7 = arith.constant 0 : index
    %c0_8 = arith.constant 0 : index
    %c0_9 = arith.constant 0 : index
    %7 = vector.load %arg5[%c0_7, %c0_8, %c0_9] : memref<1x128x128xf32, #tpu.memory_space<vmem>>, vector<1x128x128xf32>
    %8 = vector.shape_cast %7 : vector<1x128x128xf32> to vector<128x128xf32>
    %cst = arith.constant dense<0.000000e+00> : vector<8x256xf32>
    %9 = tpu.matmul %4, %6, %cst {dimension_numbers = #tpu.dot_dimension_numbers<[1], [0], [0], [1], [0, 0, 1, 1], [], []>} : vector<8x128xf32>, vector<128x256xf32>, vector<8x256xf32> -> vector<8x256xf32>
    %10 = vector.extract_strided_slice %9 {offsets = [0, 0], sizes = [8, 128], strides = [1, 1]} : vector<8x256xf32> to vector<8x128xf32>
    %11 = vector.extract_strided_slice %9 {offsets = [0, 128], sizes = [8, 128], strides = [1, 1]} : vector<8x256xf32> to vector<8x128xf32>
    %12 = arith.negf %10 : vector<8x128xf32>
    %13 = math.exp %12 : vector<8x128xf32>
    %cst_10 = arith.constant 1.000000e+00 : f32
    %14 = vector.broadcast %cst_10 : f32 to vector<8x128xf32>
    %15 = arith.addf %14, %13 : vector<8x128xf32>
    %16 = arith.divf %14, %15 : vector<8x128xf32>
    %17 = arith.mulf %10, %16 : vector<8x128xf32>
    %18 = arith.mulf %11, %17 : vector<8x128xf32>
    %c0_11 = arith.constant 0 : index
    %c0_12 = arith.constant 0 : index
    %19 = vector.load %arg7[%c0_11, %c0_12] : memref<8x128xf32, #tpu.memory_space<vmem>>, vector<8x128xf32>
    %cst_13 = arith.constant dense<0.000000e+00> : vector<8x128xf32>
    %20 = tpu.matmul %18, %8, %cst_13 {dimension_numbers = #tpu.dot_dimension_numbers<[1], [0], [0], [1], [0, 0, 1, 1], [], []>} : vector<8x128xf32>, vector<128x128xf32>, vector<8x128xf32> -> vector<8x128xf32>
    %21 = arith.addf %19, %20 : vector<8x128xf32>
    %c0_14 = arith.constant 0 : index
    %c0_15 = arith.constant 0 : index
    %22 = vector.load %arg7[%c0_14, %c0_15] : memref<8x128xf32, #tpu.memory_space<vmem>>, vector<8x128xf32>
    tpu.vector_store %arg7[%c0_14, %c0_15], %21 {strides = array<i32>} : memref<8x128xf32, #tpu.memory_space<vmem>>, vector<8x128xf32>,
    %c1_i32 = arith.constant 1 : i32
    %23 = arith.cmpi eq, %arg2, %c1_i32 : i32
    %24 = arith.extui %23 : i1 to i32
    %c0_i32_16 = arith.constant 0 : i32
    %25 = arith.cmpi ne, %24, %c0_i32_16 : i32
    scf.if %25 {
      %c0_17 = arith.constant 0 : index
      %c0_18 = arith.constant 0 : index
      %26 = vector.load %arg7[%c0_17, %c0_18] : memref<8x128xf32, #tpu.memory_space<vmem>>, vector<8x128xf32>
      %c0_19 = arith.constant 0 : index
      %c0_20 = arith.constant 0 : index
      %c0_21 = arith.constant 0 : index
      %27 = vector.load %arg6[%c0_19, %c0_20, %c0_21] : memref<1x8x128xf32, #tpu.memory_space<vmem>>, vector<1x8x128xf32>
      %28 = vector.shape_cast %27 : vector<1x8x128xf32> to vector<8x128xf32>
      %29 = vector.shape_cast %26 : vector<8x128xf32> to vector<1x8x128xf32>
      tpu.vector_store %arg6[%c0_19, %c0_20, %c0_21], %29 {strides = array<i32>} : memref<1x8x128xf32, #tpu.memory_space<vmem>>, vector<1x8x128xf32>,
    } else {
    }
    return
  }
  func.func @transform_0(%arg0: i32, %arg1: i32, %arg2: i32) -> (i32, i32, i32) {
    %c0_i32 = arith.constant 0 : i32
    %c0_i32_0 = arith.constant 0 : i32
    return %arg0, %arg1, %c0_i32 : i32, i32, i32
  }
  func.func @transform_1(%arg0: i32, %arg1: i32, %arg2: i32) -> (i32, i32, i32, i32) {
    %c0_i32 = arith.constant 0 : i32
    %c0_i32_0 = arith.constant 0 : i32
    %c0_i32_1 = arith.constant 0 : i32
    return %arg0, %arg2, %c0_i32, %c0_i32_0 : i32, i32, i32, i32
  }
  func.func @transform_2(%arg0: i32, %arg1: i32, %arg2: i32) -> (i32, i32, i32) {
    %c0_i32 = arith.constant 0 : i32
    %c0_i32_0 = arith.constant 0 : i32
    return %arg0, %arg2, %c0_i32 : i32, i32, i32
  }
  func.func @transform_3(%arg0: i32, %arg1: i32, %arg2: i32) -> (i32, i32, i32) {
    %c0_i32 = arith.constant 0 : i32
    %c0_i32_0 = arith.constant 0 : i32
    return %arg0, %arg1, %c0_i32 : i32, i32, i32
  }
}

</mosaic_0001>

<llo_original>
// kernel: tpu_custom_call.1
$region0: #{tpu_custom_call.1}
  #allocation0 [shape = 'u32[]', space=smem, size = 0x4, offset = 0x4, fixed_abs, tag = 'smem constant byte address 0x4 - core index']
  #allocation1 [shape = 'u32[72,128]{1,0:T(1,128)}', space=vmem, size = 0x9000, scoped, tag = 'internal scratch']
  #allocation2 [shape = 'f32[8,128]{1,0:T(8,128)}', space=vmem, size = 0x1000, scoped, tag = 'scratch operand']
  %s0 = inlined_call_operand.hbm [shape: f32[4,16,128], index: 0, kind: input, shape index: {}]
  %s1 = inlined_call_operand.hbm [shape: f32[4,2,128,256], index: 1, kind: input, shape index: {}]
  %s2 = inlined_call_operand.hbm [shape: f32[4,256,128], index: 2, kind: input, shape index: {}]
  %s3 = inlined_call_operand.hbm [shape: f32[4,16,128], index: 3, kind: output, shape index: {}]
  %s4 = sld [smem:[#allocation0]]
  $region65: #{tpu_custom_call.1} parent=0
    _
  %s6 = ssub.s32 1, %s4
  %s7 = scalar_select 0, %s6, %s4
  $region1: #{tpu_custom_call.1} parent=0
    #allocation3 [shape = 'u8[8192]{0}', space=vmem, size = 0x2000, scoped, tag = 'input window, operand 0']
    #allocation4 [shape = 's32[2]{0}', space=sflag, size = 0x8, scoped, tag = 'scoped memory for tpu_custom_call.1']
    #allocation5 [shape = 's32[2]{0}', space=sflag, size = 0x8, scoped, tag = 'scoped memory for tpu_custom_call.1']
    #allocation6 [shape = 'u8[262144]{0}', space=vmem, size = 0x40000, scoped, tag = 'input window, operand 1']
    #allocation7 [shape = 's32[2]{0}', space=sflag, size = 0x8, scoped, tag = 'scoped memory for tpu_custom_call.1']
    #allocation8 [shape = 'u8[131072]{0}', space=vmem, size = 0x20000, scoped, tag = 'input window, operand 2']
    #allocation9 [shape = 'u8[8192]{0}', space=vmem, size = 0x2000, scoped, tag = 'output window, operand 0']
    %8 = vsyncpa [#allocation4], 0
    %s9 = scalar_lea.sflag [#allocation4], 1
    %10 = vsyncpa %s9, 0
    %11 = vsyncpa [#allocation7], 0
    %s12 = scalar_lea.sflag [#allocation7], 1
    %13 = vsyncpa %s12, 0
    %14 = vsyncpa [#allocation5], 0
    %s15 = scalar_lea.sflag [#allocation5], 1
    %16 = vsyncpa %s15, 0
    loop: start=0, step=1, limit=18
    $region2: #{tpu_custom_call.1} parent=1 // loop_pre_header
      _
    $region3: #{tpu_custom_call.1} parent=1 // loop_header
      %s18 = sphi 0, %s22
      %p19 = scmp.ge.s32.totalorder %s18, 18
      %s25 = sphi 0, %s44
      %s26 = sphi 0, %s40
      %s27 = sphi 0, %s36
      %s28 = sphi 0, %s25
      %s29 = sphi 0, %s26
      %s30 = sphi 0, %s27
      %s31 = sphi 0, %s28
      %s32 = sphi 0, %s29
      %s33 = sphi 0, %s30
      %s49 = sphi 0, %s51
      %s52 = sphi 0, %s49
      %s53 = sphi 0, %s52
      %s69 = sphi 0, %s53
      %s77 = sphi 0, %s79
      %s80 = sphi 0, %s77
      %s81 = sphi 0, %s80
      %s97 = sphi 0, %s81
      %s105 = sphi 0, %s107
      %s108 = sphi 0, %s105
      %s109 = sphi 0, %s108
      %s125 = sphi 0, %s109
      %s133 = sphi 0, %s135
      %s136 = sphi 0, %s133
      %s137 = sphi 0, %s136
      %s153 = sphi 0, %s137
    $region4: #{tpu_custom_call.1} parent=1 // loop_header_branch
      %21 = sbr.rel (%p19) target = $region8
    $region5: #{tpu_custom_call.1} parent=1 // loop_body
      %s23 = ssub.s32 %s18, 1
      %s24 = ssub.s32 %s18, 2
      %s34 = sadd.s32 1, %s27
      %p35 = scmp.ge.s32.totalorder %s34, 2
      %s36 = scalar_select %p35, 0, %s34
      %s37 = sadd.s32 1, %s26
      %s38 = scalar_select %p35, %s37, %s26
      %p39 = scmp.ge.s32.totalorder %s38, 2
      %s40 = scalar_select %p39, 0, %s38
      %s41 = sadd.s32 1, %s25
      %s42 = scalar_select %p39, %s41, %s25
      %p43 = scmp.ge.s32.totalorder %s42, 4
      %s44 = scalar_select %p43, 0, %s42
      %s45 = ssub.s32 %s25, %s44
      %s46 = ssub.s32 %s26, %s40
      %s47 = sor.u32 %s45, %s46
      %p48 = scmp.eq.s32.totalorder %s47, 0
      %s50 = sadd.s32 %s49, 1
      %s51 = scalar_select %p48, %s49, %s50
      %p54 = pneg %p48
      %p55 = scmp.eq.s32.totalorder %s18, 15
      %p56 = por %p54, %p55
      %p57 = scmp.ne.s32.totalorder %s49, %s52
      %p58 = scmp.eq.s32.totalorder %s18, 0
      %p59 = por %p57, %p58
      %p60 = scmp.ne.s32.totalorder %s49, %s52
      %p61 = scmp.eq.s32.totalorder %s23, 15
      %p62 = por %p60, %p61
      %p63 = scmp.ne.s32.totalorder %s52, %s53
      %p64 = scmp.eq.s32.totalorder %s23, 0
      %p65 = por %p63, %p64
      %p66 = scmp.ne.s32.totalorder %s52, %s53
      %p67 = scmp.eq.s32.totalorder %s24, 15
      %p68 = por %p66, %p67
      %p70 = scmp.ne.s32.totalorder %s53, %s69
      %p71 = scmp.eq.s32.totalorder %s24, 0
      %p72 = por %p70, %p71
      %s73 = ssub.s32 %s25, %s44
      %s74 = ssub.s32 %s27, %s36
      %s75 = sor.u32 %s73, %s74
      %p76 = scmp.eq.s32.totalorder %s75, 0
      %s78 = sadd.s32 %s77, 1
      %s79 = scalar_select %p76, %s77, %s78
      %p82 = pneg %p76
      %p83 = scmp.eq.s32.totalorder %s18, 15
      %p84 = por %p82, %p83
      %p85 = scmp.ne.s32.totalorder %s77, %s80
      %p86 = scmp.eq.s32.totalorder %s18, 0
      %p87 = por %p85, %p86
      %p88 = scmp.ne.s32.totalorder %s77, %s80
      %p89 = scmp.eq.s32.totalorder %s23, 15
      %p90 = por %p88, %p89
      %p91 = scmp.ne.s32.totalorder %s80, %s81
      %p92 = scmp.eq.s32.totalorder %s23, 0
      %p93 = por %p91, %p92
      %p94 = scmp.ne.s32.totalorder %s80, %s81
      %p95 = scmp.eq.s32.totalorder %s24, 15
      %p96 = por %p94, %p95
      %p98 = scmp.ne.s32.totalorder %s81, %s97
      %p99 = scmp.eq.s32.totalorder %s24, 0
      %p100 = por %p98, %p99
      %s101 = ssub.s32 %s25, %s44
      %s102 = ssub.s32 %s27, %s36
      %s103 = sor.u32 %s101, %s102
      %p104 = scmp.eq.s32.totalorder %s103, 0
      %s106 = sadd.s32 %s105, 1
      %s107 = scalar_select %p104, %s105, %s106
      %p110 = pneg %p104
      %p111 = scmp.eq.s32.totalorder %s18, 15
      %p112 = por %p110, %p111
      %p113 = scmp.ne.s32.totalorder %s105, %s108
      %p114 = scmp.eq.s32.totalorder %s18, 0
      %p115 = por %p113, %p114
      %p116 = scmp.ne.s32.totalorder %s105, %s108
      %p117 = scmp.eq.s32.totalorder %s23, 15
      %p118 = por %p116, %p117
      %p119 = scmp.ne.s32.totalorder %s108, %s109
      %p120 = scmp.eq.s32.totalorder %s23, 0
      %p121 = por %p119, %p120
      %p122 = scmp.ne.s32.totalorder %s108, %s109
      %p123 = scmp.eq.s32.totalorder %s24, 15
      %p124 = por %p122, %p123
      %p126 = scmp.ne.s32.totalorder %s109, %s125
      %p127 = scmp.eq.s32.totalorder %s24, 0
      %p128 = por %p126, %p127
      %s129 = ssub.s32 %s25, %s44
      %s130 = ssub.s32 %s26, %s40
      %s131 = sor.u32 %s129, %s130
      %p132 = scmp.eq.s32.totalorder %s131, 0
      %s134 = sadd.s32 %s133, 1
      %s135 = scalar_select %p132, %s133, %s134
      %p138 = pneg %p132
      %p139 = scmp.eq.s32.totalorder %s18, 15
      %p140 = por %p138, %p139
      %p141 = scmp.ne.s32.totalorder %s133, %s136
      %p142 = scmp.eq.s32.totalorder %s18, 0
      %p143 = por %p141, %p142
      %p144 = scmp.ne.s32.totalorder %s133, %s136
      %p145 = scmp.eq.s32.totalorder %s23, 15
      %p146 = por %p144, %p145
      %p147 = scmp.ne.s32.totalorder %s136, %s137
      %p148 = scmp.eq.s32.totalorder %s23, 0
      %p149 = por %p147, %p148
      %p150 = scmp.ne.s32.totalorder %s136, %s137
      %p151 = scmp.eq.s32.totalorder %s24, 15
      %p152 = por %p150, %p151
      %p154 = scmp.ne.s32.totalorder %s137, %s153
      %p155 = scmp.eq.s32.totalorder %s24, 0
      %p156 = por %p154, %p155
      %p157 = scmp.le.s32.totalorder 1, %s18
      %p158 = scmp.lt.s32.totalorder %s18, 17
      %p159 = pnand %p157, %p158
      %p160 = pneg %p159
      // Predicated region
      $region9: #{tpu_custom_call.1} parent=5 // pred_check
        _
      $region10: #{tpu_custom_call.1} parent=5 // pred_check_branch
        %162 = sbr.rel (%p159) target = $region12
      $region11: #{tpu_custom_call.1} parent=5 // pred_region
        %s163 = ssub.s32 %s18, 1
      $region12: #{tpu_custom_call.1} parent=5 // pred_fallthru
        _
      %p164 = scmp.lt.s32.totalorder %s18, 16
      // Predicated region
      $region13: #{tpu_custom_call.1} parent=5 // pred_check
        %p165 = pneg %p164
      $region14: #{tpu_custom_call.1} parent=5 // pred_check_branch
        %167 = sbr.rel (%p165) target = $region16
      $region15: #{tpu_custom_call.1} parent=5 // pred_region
        // Predicated region
        $region17: #{tpu_custom_call.1} parent=15 // pred_check
          %p168 = pneg %p59
        $region18: #{tpu_custom_call.1} parent=15 // pred_check_branch
          %170 = sbr.rel (%p168) target = $region20
        $region19: #{tpu_custom_call.1} parent=15 // pred_region
          %s171 = sand.u32 %s49, 1
          %s172 = scalar_lea.sflag [#allocation4], %s171
          %s173 = sand.u32 %s49, 1
          %s174 = smul.addr %s173, 8
          %s175 = scalar_lea.vmem [#allocation3], %s174
          %177 = vsyncadd %s172, 0
          %s178 = smul.addr %s25, 2
          %s179 = sadd.s32 %s26, %s178
          %s180 = smul.addr %s179, 8
          %s181 = scalar_lea.hbm %s0, %s180
          %s183 = sshll.u32 %s181, 4
          %s184 = int_to_ptr.hbm [resolvable:$true] %s183
          %s185 = sshll.u32 %s175, 4
          %s186 = int_to_ptr.vmem [resolvable:$true] %s185
          %188 = dma.hbm_to_vmem [thread:$0]  %s184, 128, %s186, %s172
        $region20: #{tpu_custom_call.1} parent=15 // pred_fallthru
          _
        // Predicated region
        $region21: #{tpu_custom_call.1} parent=15 // pred_check
          %p189 = pneg %p87
        $region22: #{tpu_custom_call.1} parent=15 // pred_check_branch
          %191 = sbr.rel (%p189) target = $region24
        $region23: #{tpu_custom_call.1} parent=15 // pred_region
          %s192 = sand.u32 %s18, 1
          %s193 = scalar_lea.sflag [#allocation7], %s192
          %s194 = sand.u32 %s77, 1
          %s195 = smul.addr %s194, 256
          %s196 = scalar_lea.vmem [#allocation6], %s195
          %198 = vsyncadd %s193, 0
          %s199 = smul.addr %s27, 32
          %s200 = smul.addr %s25, 64
          %s201 = sadd.s32 %s199, %s200
          %s202 = smul.addr %s201, 8
          %s203 = scalar_lea.hbm %s1, %s202
          %s204 = sshll.u32 %s203, 4
          %s205 = int_to_ptr.hbm [resolvable:$true] %s204
          %s206 = sshll.u32 %s196, 4
          %s207 = int_to_ptr.vmem [resolvable:$true] %s206
          %212 = dma.hbm_to_vmem [thread:$0]  %s205, 4096, %s207, %s193, 256, 256, 16
        $region24: #{tpu_custom_call.1} parent=15 // pred_fallthru
          _
        // Predicated region
        $region25: #{tpu_custom_call.1} parent=15 // pred_check
          %p213 = pneg %p115
        $region26: #{tpu_custom_call.1} parent=15 // pred_check_branch
          %215 = sbr.rel (%p213) target = $region28
        $region27: #{tpu_custom_call.1} parent=15 // pred_region
          %s216 = sand.u32 %s18, 1
          %s217 = scalar_lea.sflag [#allocation7], %s216
          %s218 = sand.u32 %s105, 1
          %s219 = smul.addr %s218, 128
          %s220 = scalar_lea.vmem [#allocation8], %s219
          %s221 = smul.u32 16, %s27
          %223 = vsyncadd %s217, 0
          %s224 = smul.addr %s25, 32
          %s225 = sadd.s32 %s221, %s224
          %s226 = smul.addr %s225, 8
          %s227 = scalar_lea.hbm %s2, %s226
          %s228 = sshll.u32 %s227, 4
          %s229 = int_to_ptr.hbm [resolvable:$true] %s228
          %s230 = sshll.u32 %s220, 4
          %s231 = int_to_ptr.vmem [resolvable:$true] %s230
          %236 = dma.hbm_to_vmem [thread:$0]  %s229, 2048, %s231, %s217, 128, 128, 8
        $region28: #{tpu_custom_call.1} parent=15 // pred_fallthru
          _
      $region16: #{tpu_custom_call.1} parent=5 // pred_fallthru
        _
      %p237 = scmp.le.s32.totalorder 1, %s18
      %p238 = scmp.lt.s32.totalorder %s18, 17
      %p239 = pnand %p237, %p238
      %p240 = pneg %p239
      // Predicated region
      $region29: #{tpu_custom_call.1} parent=5 // pred_check
        _
      $region30: #{tpu_custom_call.1} parent=5 // pred_check_branch
        %242 = sbr.rel (%p239) target = $region32
      $region31: #{tpu_custom_call.1} parent=5 // pred_region
        %s243 = ssub.s32 %s18, 1
        %s244 = sand.u32 %s52, 1
        %s245 = scalar_lea.sflag [#allocation4], %s244
        %s246 = sand.u32 %s52, 1
        %s247 = smul.addr %s246, 8
        %s248 = scalar_lea.vmem [#allocation3], %s247
        // Predicated region
        $region33: #{tpu_custom_call.1} parent=31 // pred_check
          %p249 = pneg %p65
        $region34: #{tpu_custom_call.1} parent=31 // pred_check_branch
          %251 = sbr.rel (%p249) target = $region36
        $region35: #{tpu_custom_call.1} parent=31 // pred_region
          %253 = dma.done %s245, 128
        $region36: #{tpu_custom_call.1} parent=31 // pred_fallthru
          _
        %s254 = sand.u32 %s23, 1
        %s255 = scalar_lea.sflag [#allocation7], %s254
        %s256 = sand.u32 %s80, 1
        %s257 = smul.addr %s256, 256
        %s258 = scalar_lea.vmem [#allocation6], %s257
        // Predicated region
        $region37: #{tpu_custom_call.1} parent=31 // pred_check
          %p259 = pneg %p93
        $region38: #{tpu_custom_call.1} parent=31 // pred_check_branch
          %261 = sbr.rel (%p259) target = $region40
        $region39: #{tpu_custom_call.1} parent=31 // pred_region
          %263 = dma.done %s255, 4096
        $region40: #{tpu_custom_call.1} parent=31 // pred_fallthru
          _
        %s264 = sand.u32 %s23, 1
        %s265 = scalar_lea.sflag [#allocation7], %s264
        %s266 = sand.u32 %s108, 1
        %s267 = smul.addr %s266, 128
        %s268 = scalar_lea.vmem [#allocation8], %s267
        // Predicated region
        $region41: #{tpu_custom_call.1} parent=31 // pred_check
          %p269 = pneg %p121
        $region42: #{tpu_custom_call.1} parent=31 // pred_check_branch
          %271 = sbr.rel (%p269) target = $region44
        $region43: #{tpu_custom_call.1} parent=31 // pred_region
          %273 = dma.done %s265, 2048
        $region44: #{tpu_custom_call.1} parent=31 // pred_fallthru
          _
        %s274 = sand.u32 %s52, 1
        %s275 = scalar_lea.sflag [#allocation4], %s274
        %s276 = sand.u32 %s52, 1
        %s277 = smul.addr %s276, 8
        %s278 = scalar_lea.vmem [#allocation3], %s277
        %p279 = pneg %p65
        %p280 = pneg %p62
        %s281 = sand.u32 %s23, 1
        %s282 = scalar_lea.sflag [#allocation7], %s281
        %s283 = sand.u32 %s80, 1
        %s284 = smul.addr %s283, 256
        %s285 = scalar_lea.vmem [#allocation6], %s284
        %p286 = pneg %p93
        %p287 = pneg %p90
        %s288 = sand.u32 %s23, 1
        %s289 = scalar_lea.sflag [#allocation7], %s288
        %s290 = sand.u32 %s108, 1
        %s291 = smul.addr %s290, 128
        %s292 = scalar_lea.vmem [#allocation8], %s291
        %p293 = pneg %p121
        %p294 = pneg %p118
        %p295 = pneg %p149
        %p296 = pneg %p146
        %s297 = sand.u32 %s136, 1
        %s298 = scalar_lea.sflag [#allocation5], %s297
        %s299 = sand.u32 %s136, 1
        %s300 = smul.addr %s299, 8
        %s301 = scalar_lea.vmem [#allocation9], %s300
        %s302 = smul.u32 16, %s30
        %p303 = scmp.eq.s32.totalorder %s30, 0
        // Predicated region
        $region45: #{tpu_custom_call.1} parent=31 // pred_check
          %p304 = pneg %p303
        $region46: #{tpu_custom_call.1} parent=31 // pred_check_branch
          %306 = sbr.rel (%p304) target = $region48
        $region47: #{tpu_custom_call.1} parent=31 // pred_region
          %307 = vst [vmem:[#allocation2] sm:$0xff] 0.0
        $region48: #{tpu_custom_call.1} parent=31 // pred_fallthru
          _
        %v308 = vld [vmem:[%s248] sm:$0xff]
        %v309 = vld [vmem:[%s258] sm:$0xff]
        %v310 = vld [vmem:[%s258 + $0x8] sm:$0xff]
        %v311 = vld [vmem:[%s258 + $0x10] sm:$0xff]
        %v312 = vld [vmem:[%s258 + $0x18] sm:$0xff]
        %v313 = vld [vmem:[%s258 + $0x20] sm:$0xff]
        %v314 = vld [vmem:[%s258 + $0x28] sm:$0xff]
        %v315 = vld [vmem:[%s258 + $0x30] sm:$0xff]
        %v316 = vld [vmem:[%s258 + $0x38] sm:$0xff]
        %v317 = vld [vmem:[%s258 + $0x40] sm:$0xff]
        %v318 = vld [vmem:[%s258 + $0x48] sm:$0xff]
        %v319 = vld [vmem:[%s258 + $0x50] sm:$0xff]
        %v320 = vld [vmem:[%s258 + $0x58] sm:$0xff]
        %v321 = vld [vmem:[%s258 + $0x60] sm:$0xff]
        %v322 = vld [vmem:[%s258 + $0x68] sm:$0xff]
        %v323 = vld [vmem:[%s258 + $0x70] sm:$0xff]
        %v324 = vld [vmem:[%s258 + $0x78] sm:$0xff]
        %v325 = vld [vmem:[%s258 + $0x80] sm:$0xff]
        %v326 = vld [vmem:[%s258 + $0x88] sm:$0xff]
        %v327 = vld [vmem:[%s258 + $0x90] sm:$0xff]
        %v328 = vld [vmem:[%s258 + $0x98] sm:$0xff]
        %v329 = vld [vmem:[%s258 + $0xa0] sm:$0xff]
        %v330 = vld [vmem:[%s258 + $0xa8] sm:$0xff]
        %v331 = vld [vmem:[%s258 + $0xb0] sm:$0xff]
        %v332 = vld [vmem:[%s258 + $0xb8] sm:$0xff]
        %v333 = vld [vmem:[%s258 + $0xc0] sm:$0xff]
        %v334 = vld [vmem:[%s258 + $0xc8] sm:$0xff]
        %v335 = vld [vmem:[%s258 + $0xd0] sm:$0xff]
        %v336 = vld [vmem:[%s258 + $0xd8] sm:$0xff]
        %v337 = vld [vmem:[%s258 + $0xe0] sm:$0xff]
        %v338 = vld [vmem:[%s258 + $0xe8] sm:$0xff]
        %v339 = vld [vmem:[%s258 + $0xf0] sm:$0xff]
        %v340 = vld [vmem:[%s258 + $0xf8] sm:$0xff]
        %v341 = vld [vmem:[%s268] sm:$0xff]
        %v342 = vld [vmem:[%s268 + $0x8] sm:$0xff]
        %v343 = vld [vmem:[%s268 + $0x10] sm:$0xff]
        %v344 = vld [vmem:[%s268 + $0x18] sm:$0xff]
        %v345 = vld [vmem:[%s268 + $0x20] sm:$0xff]
        %v346 = vld [vmem:[%s268 + $0x28] sm:$0xff]
        %v347 = vld [vmem:[%s268 + $0x30] sm:$0xff]
        %v348 = vld [vmem:[%s268 + $0x38] sm:$0xff]
        %v349 = vld [vmem:[%s268 + $0x40] sm:$0xff]
        %v350 = vld [vmem:[%s268 + $0x48] sm:$0xff]
        %v351 = vld [vmem:[%s268 + $0x50] sm:$0xff]
        %v352 = vld [vmem:[%s268 + $0x58] sm:$0xff]
        %v353 = vld [vmem:[%s268 + $0x60] sm:$0xff]
        %v354 = vld [vmem:[%s268 + $0x68] sm:$0xff]
        %v355 = vld [vmem:[%s268 + $0x70] sm:$0xff]
        %v356 = vld [vmem:[%s268 + $0x78] sm:$0xff]
        %357 = vmatpush.msra.mxu0 %v339
        %358 = vmatpush.msra.mxu0 %v337
        %359 = vmatpush.msra.mxu0 %v335
        %360 = vmatpush.msra.mxu0 %v333
        %361 = vmatpush.msra.mxu0 %v331
        %362 = vmatpush.msra.mxu0 %v329
        %363 = vmatpush.msra.mxu0 %v327
        %364 = vmatpush.msra.mxu0 %v325
        %365 = vmatpush.msra.mxu0 %v323
        %366 = vmatpush.msra.mxu0 %v321
        %367 = vmatpush.msra.mxu0 %v319
        %368 = vmatpush.msra.mxu0 %v317
        %369 = vmatpush.msra.mxu0 %v315
        %370 = vmatpush.msra.mxu0 %v313
        %371 = vmatpush.msra.mxu0 %v311
        %372 = vmatpush.msra.mxu0 %v309
        %373 = vmatmul.f32.gmra.mxu0 %v308
        %v374 = vpop.f32.mrf.mxu0
        %v375 = vadd.f32 0.0, %v374
        %376 = vdwg.mxu0
        %377 = vmatpush.msra.mxu0 %v340
        %378 = vmatpush.msra.mxu0 %v338
        %379 = vmatpush.msra.mxu0 %v336
        %380 = vmatpush.msra.mxu0 %v334
        %381 = vmatpush.msra.mxu0 %v332
        %382 = vmatpush.msra.mxu0 %v330
        %383 = vmatpush.msra.mxu0 %v328
        %384 = vmatpush.msra.mxu0 %v326
        %385 = vmatpush.msra.mxu0 %v324
        %386 = vmatpush.msra.mxu0 %v322
        %387 = vmatpush.msra.mxu0 %v320
        %388 = vmatpush.msra.mxu0 %v318
        %389 = vmatpush.msra.mxu0 %v316
        %390 = vmatpush.msra.mxu0 %v314
        %391 = vmatpush.msra.mxu0 %v312
        %392 = vmatpush.msra.mxu0 %v310
        %393 = vmatmul.f32.gmra.mxu0 %v308
        %v394 = vpop.f32.mrf.mxu0
        %v395 = vadd.f32 0.0, %v394
        %396 = vdwg.mxu0
        %v397 = vxor.u32 %v375, 2147483648
        %v398 = vmul.f32 %v397, 1.442695
        %v399 = vpow.pop %v398
        %v400 = vadd.f32 %v399, 1.0
        %v401 = vrcp.pop %v400
        %v402 = vmul.f32 %v400, %v401
        %v403 = vsub.f32 1.0, %v402
        %v404 = vmul.f32 %v401, %v403
        %v405 = vadd.f32 %v401, %v404
        %vm406 = vweird.f32 %v400
        %vm407 = vweird.f32 %v401
        %vm408 = vmor %vm406, %vm407
        %v409 = vsel %vm408, %v401, %v405
        %v410 = vand.u32 2147483647, %v400
        %vm411 = vcmp.eq.f32.partialorder %v410, 8.507059e+37
        %v412 = vand.u32 %v400, 2147483648
        %v413 = vor.u32 1.1754944e-38, %v412
        %v414 = vsel %vm411, %v413, %v409
        %v415 = vmul.f32 1.0, %v414
        %v416 = vmul.f32 %v375, %v415
        %v417 = vmul.f32 %v395, %v416
        %v418 = vld [vmem:[#allocation2] sm:$0xff]
        %419 = vmatpush.msra.mxu0 %v356
        %420 = vmatpush.msra.mxu0 %v355
        %421 = vmatpush.msra.mxu0 %v354
        %422 = vmatpush.msra.mxu0 %v353
        %423 = vmatpush.msra.mxu0 %v352
        %424 = vmatpush.msra.mxu0 %v351
        %425 = vmatpush.msra.mxu0 %v350
        %426 = vmatpush.msra.mxu0 %v349
        %427 = vmatpush.msra.mxu0 %v348
        %428 = vmatpush.msra.mxu0 %v347
        %429 = vmatpush.msra.mxu0 %v346
        %430 = vmatpush.msra.mxu0 %v345
        %431 = vmatpush.msra.mxu0 %v344
        %432 = vmatpush.msra.mxu0 %v343
        %433 = vmatpush.msra.mxu0 %v342
        %434 = vmatpush.msra.mxu0 %v341
        %435 = vmatmul.f32.gmra.mxu0 %v417
        %v436 = vpop.f32.mrf.mxu0
        %v437 = vadd.f32 0.0, %v436
        %438 = vdwg.mxu0
        %v439 = vadd.f32 %v418, %v437
        %440 = vst [vmem:[#allocation2] sm:$0xff] %v439
        %p441 = scmp.eq.s32.totalorder %s30, 1
        // Predicated region
        $region49: #{tpu_custom_call.1} parent=31 // pred_check
          %p442 = pneg %p441
        $region50: #{tpu_custom_call.1} parent=31 // pred_check_branch
          %444 = sbr.rel (%p442) target = $region52
        $region51: #{tpu_custom_call.1} parent=31 // pred_region
          %v445 = vld [vmem:[#allocation2] sm:$0xff]
          %446 = vst [vmem:[%s301] sm:$0xff] %v445
        $region52: #{tpu_custom_call.1} parent=31 // pred_fallthru
          _
        %s447 = sand.u32 %s136, 1
        %s448 = scalar_lea.sflag [#allocation5], %s447
        %s449 = sand.u32 %s136, 1
        %s450 = smul.addr %s449, 8
        %s451 = scalar_lea.vmem [#allocation9], %s450
        // Predicated region
        $region53: #{tpu_custom_call.1} parent=31 // pred_check
          %p452 = pneg %p146
        $region54: #{tpu_custom_call.1} parent=31 // pred_check_branch
          %454 = sbr.rel (%p452) target = $region56
        $region55: #{tpu_custom_call.1} parent=31 // pred_region
          %456 = vsyncadd %s448, 0
          %s457 = smul.addr %s28, 2
          %s458 = sadd.s32 %s29, %s457
          %s459 = smul.addr %s458, 8
          %s460 = scalar_lea.hbm %s3, %s459
          %s462 = sshll.u32 %s451, 4
          %s463 = int_to_ptr.vmem [resolvable:$true] %s462
          %s464 = sshll.u32 %s460, 4
          %s465 = int_to_ptr.hbm [resolvable:$true] %s464
          %467 = dma.vmem_to_hbm [thread:$0]  %s463, 128, %s465, %s448
        $region56: #{tpu_custom_call.1} parent=31 // pred_fallthru
          _
      $region32: #{tpu_custom_call.1} parent=5 // pred_fallthru
        _
      %p468 = scmp.le.s32.totalorder 2, %s18
      // Predicated region
      $region57: #{tpu_custom_call.1} parent=5 // pred_check
        %p469 = pneg %p468
      $region58: #{tpu_custom_call.1} parent=5 // pred_check_branch
        %471 = sbr.rel (%p469) target = $region60
      $region59: #{tpu_custom_call.1} parent=5 // pred_region
        %s472 = ssub.s32 %s18, 2
        // Predicated region
        $region61: #{tpu_custom_call.1} parent=59 // pred_check
          %p473 = pneg %p152
        $region62: #{tpu_custom_call.1} parent=59 // pred_check_branch
          %475 = sbr.rel (%p473) target = $region64
        $region63: #{tpu_custom_call.1} parent=59 // pred_region
          %s476 = sand.u32 %s137, 1
          %s477 = scalar_lea.sflag [#allocation5], %s476
          %s478 = sand.u32 %s137, 1
          %s479 = smul.addr %s478, 8
          %s480 = scalar_lea.vmem [#allocation9], %s479
          %482 = dma.done %s477, 128
        $region64: #{tpu_custom_call.1} parent=59 // pred_fallthru
          _
      $region60: #{tpu_custom_call.1} parent=5 // pred_fallthru
        _
    $region6: #{tpu_custom_call.1} parent=1 // loop_footer
      %s22 = sadd.s32 1, %s18
    $region7: #{tpu_custom_call.1} parent=1 // loop_footer_branch
      %17 = sbr.rel target = $region3
    $region8: #{tpu_custom_call.1} parent=1 // loop_exit
      _
    %483 = vsyncpa [#allocation4], 1
    %s484 = scalar_lea.sflag [#allocation4], 1
    %485 = vsyncpa %s484, 1
    %486 = vsyncpa [#allocation7], 1
    %s487 = scalar_lea.sflag [#allocation7], 1
    %488 = vsyncpa %s487, 1
    %489 = vsyncpa [#allocation5], 1
    %s490 = scalar_lea.sflag [#allocation5], 1
    %491 = vsyncpa %s490, 1

</llo_original>
